<compile_context>
chip_gen: v5e
topology: v5e:2x2
jax: 0.10.0
libtpu: 0.0.40
codegen_flags: <defaults>
</compile_context>

<pallas_src>
import jax
import jax.numpy as jnp
from jax.experimental import pallas as pl
from jax.experimental.pallas import tpu as pltpu


# ----------------------------- Phase 1: argmax ----------------------------- #

def _argmax_kernel(x_ref, idx_ref, m_sc, a_sc):
    k = pl.program_id(1)

    @pl.when(k == 0)
    def _init():
        m_sc[...] = jnp.full_like(m_sc, -jnp.inf)
        a_sc[...] = jnp.zeros_like(a_sc)

    x = x_ref[...]                                   # (bB, bV)
    bB, bV = x.shape
    base = k * bV
    lane = jax.lax.broadcasted_iota(jnp.int32, (bB, bV), 1) + base

    tile_max = jnp.max(x, axis=1, keepdims=True)     # (bB, 1)
    big = jnp.iinfo(jnp.int32).max
    # first-occurrence argmax within this vocab tile
    tile_arg = jnp.min(jnp.where(x == tile_max, lane, big),
                       axis=1, keepdims=True)        # (bB, 1) int32

    # strict ">" keeps the earlier tile's index on ties -> torch first-occurrence
    better = tile_max > m_sc[...]
    a_sc[...] = jnp.where(better, tile_arg, a_sc[...])
    m_sc[...] = jnp.where(better, tile_max, m_sc[...])

    @pl.when(k == pl.num_programs(1) - 1)
    def _fin():
        idx_ref[...] = a_sc[...]


def _pick_block(dim, target):
    # Use `target` only if it evenly tiles `dim`; otherwise fall back to the
    # full dim (always legal: block == full array extent).
    if dim <= target or dim % target != 0:
        return dim
    return target


def argmax_rows(x, *, b_block=256, v_block=512):
    """x: (B, V) scores -> (B,) int32 argmax along axis=1 (first occurrence)."""
    B, V = x.shape
    bB = _pick_block(B, b_block)
    bV = _pick_block(V, v_block)
    idx = pl.pallas_call(
        _argmax_kernel,
        out_shape=jax.ShapeDtypeStruct((B, 1), jnp.int32),
        grid=(B // bB, V // bV),
        in_specs=[pl.BlockSpec((bB, bV), lambda i, k: (i, k))],
        out_specs=pl.BlockSpec((bB, 1), lambda i, k: (i, 0)),
        scratch_shapes=[pltpu.VMEM((bB, 1), jnp.float32),
                        pltpu.VMEM((bB, 1), jnp.int32)],
        compiler_params=pltpu.CompilerParams(
            dimension_semantics=("parallel", "arbitrary")),
    )(x)
    return idx.reshape(B)


# ----------------------------- Phase 2: gather ----------------------------- #

def _gather_kernel(idx_ref, emb_ref, o_ref):
    # Indices were consumed by the index_map (scalar prefetch); the selected
    # table row has already been DMA'd into emb_ref — just copy it out.
    del idx_ref
    o_ref[...] = emb_ref[...]


def gather_rows(emb_table, idx):
    """emb_table: (V, E); idx: (B,) int32 -> (B, E) gathered rows."""
    V, E = emb_table.shape
    B = idx.shape[0]
    emb3 = emb_table.reshape(V, 1, E)   # metadata-only reshape; table stays in HBM
    out3 = pl.pallas_call(
        _gather_kernel,
        out_shape=jax.ShapeDtypeStruct((B, 1, E), emb_table.dtype),
        grid_spec=pltpu.PrefetchScalarGridSpec(
            num_scalar_prefetch=1,
            grid=(B,),
            in_specs=[pl.BlockSpec((1, 1, E),
                                   lambda i, idx_ref: (idx_ref[i], 0, 0))],
            out_specs=pl.BlockSpec((1, 1, E),
                                   lambda i, idx_ref: (i, 0, 0)),
        ),
        compiler_params=pltpu.CompilerParams(
            dimension_semantics=("parallel",)),
    )(idx, emb3)
    return out3.reshape(B, E)


# ------------------------------ Module forward ----------------------------- #

@jax.jit
def embedding_lookup(x, emb_table):
    """x: (B, V) scores; emb_table: (V, E). Returns (B, E)."""
    idx = argmax_rows(x)
    return gather_rows(emb_table, idx)


if __name__ == "__main__":
    # Module config (small, consistent with the forward pass).
    size = 32        # vocab size (torch: nn.Embedding(size, emb_size))
    emb_size = 8
    batch = 8

    key = jax.random.PRNGKey(0)
    k_x, k_w = jax.random.split(key)

    # nn.Embedding default init is N(0, 1).
    emb_table = jax.random.normal(k_w, (size, emb_size), dtype=jnp.float32)
    # Input scores over the `size` axis (torch dim=1).
    x = jax.random.normal(k_x, (batch, size), dtype=jnp.float32)

    out = embedding_lookup(x, emb_table)
    out = jax.block_until_ready(out)

    # Pure-JAX reference checks.
    ref_idx = jnp.argmax(x, axis=1).astype(jnp.int32)
    ref = jnp.take(emb_table, ref_idx, axis=0)
    assert out.shape == (batch, emb_size)
    assert jnp.array_equal(argmax_rows(x), ref_idx), "argmax mismatch vs reference"
    assert jnp.allclose(out, ref), "lookup mismatch vs reference"

    print("KERNEL_OK")
</pallas_src>

<mosaic_0001>
module attributes {stable_mosaic.version = 11 : i64} {
  func.func @_gather_kernel(%arg0: i32, %arg1: memref<8xi32, #tpu.memory_space<smem>>, %arg2: memref<1x1x8xf32, #tpu.memory_space<vmem>>, %arg3: memref<1x1x8xf32, #tpu.memory_space<vmem>>) attributes {dimension_semantics = [#tpu.dimension_semantics<parallel>], iteration_bounds = array<i64: 8>, scalar_prefetch = 1 : i64, scratch_operands = 0 : i64, tpu.core_type = #tpu.core_type<tc>, window_params = [{transform_indices = @transform_0, window_bounds = array<i64: 1, 1, 8>}, {transform_indices = @transform_1, window_bounds = array<i64: 1, 1, 8>}]} {
    %c0 = arith.constant 0 : index
    %c0_0 = arith.constant 0 : index
    %c0_1 = arith.constant 0 : index
    %0 = vector.load %arg2[%c0, %c0_0, %c0_1] : memref<1x1x8xf32, #tpu.memory_space<vmem>>, vector<1x1x8xf32>
    %c0_2 = arith.constant 0 : index
    %c0_3 = arith.constant 0 : index
    %c0_4 = arith.constant 0 : index
    %1 = vector.load %arg3[%c0_2, %c0_3, %c0_4] : memref<1x1x8xf32, #tpu.memory_space<vmem>>, vector<1x1x8xf32>
    tpu.vector_store %arg3[%c0_2, %c0_3, %c0_4], %0 {strides = array<i32>} : memref<1x1x8xf32, #tpu.memory_space<vmem>>, vector<1x1x8xf32>,
    return
  }
  func.func @transform_0(%arg0: i32, %arg1: memref<8xi32, #tpu.memory_space<smem>>) -> (i32, i32, i32) {
    %0 = arith.index_cast %arg0 : i32 to index
    %1 = memref.load %arg1[%0] : memref<8xi32, #tpu.memory_space<smem>>
    %c0_i32 = arith.constant 0 : i32
    %c0_i32_0 = arith.constant 0 : i32
    %c0_i32_1 = arith.constant 0 : i32
    return %1, %c0_i32, %c0_i32_0 : i32, i32, i32
  }
  func.func @transform_1(%arg0: i32, %arg1: memref<8xi32, #tpu.memory_space<smem>>) -> (i32, i32, i32) {
    %c0_i32 = arith.constant 0 : i32
    %c0_i32_0 = arith.constant 0 : i32
    %c0_i32_1 = arith.constant 0 : i32
    return %arg0, %c0_i32, %c0_i32_0 : i32, i32, i32
  }
}

module attributes {stable_mosaic.version = 11 : i64} {
  func.func @_argmax_kernel(%arg0: i32, %arg1: i32, %arg2: memref<8x32xf32, #tpu.memory_space<vmem>>, %arg3: memref<8x1xi32, #tpu.memory_space<vmem>>, %arg4: memref<8x1xf32, #tpu.memory_space<vmem>>, %arg5: memref<8x1xi32, #tpu.memory_space<vmem>>) attributes {dimension_semantics = [#tpu.dimension_semantics<parallel>, #tpu.dimension_semantics<arbitrary>], iteration_bounds = array<i64: 1, 1>, scalar_prefetch = 0 : i64, scratch_operands = 2 : i64, tpu.core_type = #tpu.core_type<tc>, window_params = [{transform_indices = @transform_0, window_bounds = array<i64: 8, 32>}, {transform_indices = @transform_1, window_bounds = array<i64: 8, 1>}]} {
    %c0_i32 = arith.constant 0 : i32
    %0 = arith.cmpi eq, %arg1, %c0_i32 : i32
    %1 = arith.extui %0 : i1 to i32
    %c0_i32_0 = arith.constant 0 : i32
    %2 = arith.cmpi ne, %1, %c0_i32_0 : i32
    scf.if %2 {
      %cst_15 = arith.constant 0xFF800000 : f32
      %27 = vector.broadcast %cst_15 : f32 to vector<8x1xf32>
      %c0_16 = arith.constant 0 : index
      %c0_17 = arith.constant 0 : index
      %28 = vector.load %arg4[%c0_16, %c0_17] : memref<8x1xf32, #tpu.memory_space<vmem>>, vector<8x1xf32>
      tpu.vector_store %arg4[%c0_16, %c0_17], %27 {strides = array<i32>} : memref<8x1xf32, #tpu.memory_space<vmem>>, vector<8x1xf32>,
      %c0_i32_18 = arith.constant 0 : i32
      %29 = vector.broadcast %c0_i32_18 : i32 to vector<8x1xi32>
      %c0_19 = arith.constant 0 : index
      %c0_20 = arith.constant 0 : index
      %30 = vector.load %arg5[%c0_19, %c0_20] : memref<8x1xi32, #tpu.memory_space<vmem>>, vector<8x1xi32>
      tpu.vector_store %arg5[%c0_19, %c0_20], %29 {strides = array<i32>} : memref<8x1xi32, #tpu.memory_space<vmem>>, vector<8x1xi32>,
    } else {
    }
    %c0 = arith.constant 0 : index
    %c0_1 = arith.constant 0 : index
    %3 = vector.load %arg2[%c0, %c0_1] : memref<8x32xf32, #tpu.memory_space<vmem>>, vector<8x32xf32>
    %c32_i32 = arith.constant 32 : i32
    %4 = arith.muli %arg1, %c32_i32 : i32
    %5 = tpu.iota {dimensions = array<i32: 1>} : vector<8x32xi32>
    %6 = vector.broadcast %4 : i32 to vector<8x32xi32>
    %7 = arith.addi %5, %6 : vector<8x32xi32>
    %cst = arith.constant dense<0xFF800000> : vector<8xf32>
    %8 = vector.multi_reduction <maximumf>, %3, %cst [1] : vector<8x32xf32> to vector<8xf32>
    %9 = vector.shape_cast %8 : vector<8xf32> to vector<8x1xf32>
    %10 = vector.broadcast %9 : vector<8x1xf32> to vector<8x32xf32>
    %11 = arith.cmpf oeq, %3, %10 : vector<8x32xf32>
    %c2147483647_i32 = arith.constant 2147483647 : i32
    %12 = vector.broadcast %c2147483647_i32 : i32 to vector<8x32xi32>
    %13 = arith.select %11, %7, %12 : vector<8x32xi1>, vector<8x32xi32>
    %cst_2 = arith.constant dense<2147483647> : vector<8xi32>
    %14 = vector.multi_reduction <minsi>, %13, %cst_2 [1] : vector<8x32xi32> to vector<8xi32>
    %15 = vector.shape_cast %14 : vector<8xi32> to vector<8x1xi32>
    %c0_3 = arith.constant 0 : index
    %c0_4 = arith.constant 0 : index
    %16 = vector.load %arg4[%c0_3, %c0_4] : memref<8x1xf32, #tpu.memory_space<vmem>>, vector<8x1xf32>
    %17 = arith.cmpf ogt, %9, %16 : vector<8x1xf32>
    %c0_5 = arith.constant 0 : index
    %c0_6 = arith.constant 0 : index
    %18 = vector.load %arg5[%c0_5, %c0_6] : memref<8x1xi32, #tpu.memory_space<vmem>>, vector<8x1xi32>
    %19 = arith.select %17, %15, %18 : vector<8x1xi1>, vector<8x1xi32>
    %c0_7 = arith.constant 0 : index
    %c0_8 = arith.constant 0 : index
    %20 = vector.load %arg5[%c0_7, %c0_8] : memref<8x1xi32, #tpu.memory_space<vmem>>, vector<8x1xi32>
    tpu.vector_store %arg5[%c0_7, %c0_8], %19 {strides = array<i32>} : memref<8x1xi32, #tpu.memory_space<vmem>>, vector<8x1xi32>,
    %c0_9 = arith.constant 0 : index
    %c0_10 = arith.constant 0 : index
    %21 = vector.load %arg4[%c0_9, %c0_10] : memref<8x1xf32, #tpu.memory_space<vmem>>, vector<8x1xf32>
    %22 = arith.select %17, %9, %21 : vector<8x1xi1>, vector<8x1xf32>
    %c0_11 = arith.constant 0 : index
    %c0_12 = arith.constant 0 : index
    %23 = vector.load %arg4[%c0_11, %c0_12] : memref<8x1xf32, #tpu.memory_space<vmem>>, vector<8x1xf32>
    tpu.vector_store %arg4[%c0_11, %c0_12], %22 {strides = array<i32>} : memref<8x1xf32, #tpu.memory_space<vmem>>, vector<8x1xf32>,
    %c0_i32_13 = arith.constant 0 : i32
    %24 = arith.cmpi eq, %arg1, %c0_i32_13 : i32
    %25 = arith.extui %24 : i1 to i32
    %c0_i32_14 = arith.constant 0 : i32
    %26 = arith.cmpi ne, %25, %c0_i32_14 : i32
    scf.if %26 {
      %c0_15 = arith.constant 0 : index
      %c0_16 = arith.constant 0 : index
      %27 = vector.load %arg5[%c0_15, %c0_16] : memref<8x1xi32, #tpu.memory_space<vmem>>, vector<8x1xi32>
      %c0_17 = arith.constant 0 : index
      %c0_18 = arith.constant 0 : index
      %28 = vector.load %arg3[%c0_17, %c0_18] : memref<8x1xi32, #tpu.memory_space<vmem>>, vector<8x1xi32>
      tpu.vector_store %arg3[%c0_17, %c0_18], %27 {strides = array<i32>} : memref<8x1xi32, #tpu.memory_space<vmem>>, vector<8x1xi32>,
    } else {
    }
    return
  }
  func.func @transform_0(%arg0: i32, %arg1: i32) -> (i32, i32) {
    %c0_i32 = arith.constant 0 : i32
    return %arg0, %arg1 : i32, i32
  }
  func.func @transform_1(%arg0: i32, %arg1: i32) -> (i32, i32) {
    %c0_i32 = arith.constant 0 : i32
    %c0_i32_0 = arith.constant 0 : i32
    return %arg0, %c0_i32 : i32, i32
  }
}

</mosaic_0001>

<llo_original>
// kernel: embedding_lookup.2
$region0: #{embedding_lookup.2}
  #allocation0 [shape = 'u32[]', space=smem, size = 0x4, offset = 0x4, fixed_abs, tag = 'smem constant byte address 0x4 - core index']
  #allocation1 [shape = 'u32[72,128]{1,0:T(1,128)}', space=vmem, size = 0x9000, scoped, tag = 'internal scratch']
  #allocation2 [shape = 'f32[8,1]{1,0:T(8,128)}', space=vmem, size = 0x1000, scoped, tag = 'scratch operand']
  #allocation3 [shape = 's32[8,1]{1,0:T(8,128)}', space=vmem, size = 0x1000, scoped, tag = 'scratch operand']
  %s0 = inlined_call_operand.hbm [shape: f32[8,32], index: 0, kind: input, shape index: {}]
  %s1 = inlined_call_operand.vmem [shape: s32[8,1], index: 1, kind: output, shape index: {}]
  %s2 = sld [smem:[#allocation0]]
  $region26: #{embedding_lookup.2} parent=0
    _
  %s4 = ssub.s32 1, %s2
  %s5 = scalar_select 0, %s4, %s2
  $region1: #{embedding_lookup.2} parent=0
    #allocation4 [shape = 'u8[4096]{0}', space=vmem, size = 0x1000, scoped, tag = 'input window, operand 0, single buffered']
    #allocation5 [shape = 's32[1]{0}', space=sflag, size = 0x4, scoped, tag = 'scoped memory for embedding_lookup.2']
    %6 = vsyncpa [#allocation5], 0
    // Predicated region
    $region2: #{embedding_lookup.2} parent=1 // pred_check
      _
    $region3: #{embedding_lookup.2} parent=1 // pred_check_branch
      %8 = sbr.rel (0) target = $region5
    $region4: #{embedding_lookup.2} parent=1 // pred_region
      %10 = vsyncadd [#allocation5], 0
      %s12 = sshll.u32 %s0, 4
      %s13 = int_to_ptr.hbm [resolvable:$true] %s12
      %s14 = sshll.u32 [#allocation4], 4
      %s15 = int_to_ptr.vmem [resolvable:$true] %s14
      %17 = dma.hbm_to_vmem [thread:$0]  %s13, 128, %s15, [#allocation5]
    $region5: #{embedding_lookup.2} parent=1 // pred_fallthru
      _
    // Predicated region
    $region6: #{embedding_lookup.2} parent=1 // pred_check
      _
    $region7: #{embedding_lookup.2} parent=1 // pred_check_branch
      %19 = sbr.rel (0) target = $region9
    $region8: #{embedding_lookup.2} parent=1 // pred_region
      %21 = dma.done [#allocation5], 128
    $region9: #{embedding_lookup.2} parent=1 // pred_fallthru
      _
    %p22 = scmp.eq.s32.totalorder 0, 0
    // Predicated region
    $region10: #{embedding_lookup.2} parent=1 // pred_check
      %p23 = pneg %p22
    $region11: #{embedding_lookup.2} parent=1 // pred_check_branch
      %25 = sbr.rel (%p23) target = $region13
    $region12: #{embedding_lookup.2} parent=1 // pred_region
      %vm26 = vcmask 7168
      %27 = vst.msk [vmem:[#allocation2] sm:$0xff] %vm26, -inf
      %28 = vst.msk [vmem:[#allocation3] sm:$0xff] %vm26, 0
    $region13: #{embedding_lookup.2} parent=1 // pred_fallthru
      _
    %v29 = vld [vmem:[#allocation4] sm:$0xff]
    %s30 = smul.u32 0, 32
    %v31 = vlaneseq
    %v32 = vand.u32 %v31, 127
    %v33 = vstv %s30
    %v34 = vadd.s32 %v32, %v33
    %vm35 = vcmask 261120
    %v36 = vsel %vm35, %v29, -inf
    %37 = vmax.xlane.f32.xlu0 %v36
    %v38 = vpop.xlane.xlu0 %37
    %vm39 = vcmp.eq.f32.partialorder %v29, %v38
    %v40 = vsel %vm39, %v34, 2147483647
    %v41 = vsel %vm35, %v40, 2147483647
    %v42 = vand.u32 %v41, 65535
    %v43 = vshra.s32 %v41, 16
    %v44 = vcvt.s32.f32 %v42
    %v45 = vcvt.s32.f32 %v43
    %46 = vmin.xlane.f32.xlu0 %v45
    %v47 = vpop.xlane.xlu0 %46
    %vm48 = vcmp.eq.f32.partialorder %v45, %v47
    %v49 = vsel %vm48, %v44, inf
    %50 = vmin.xlane.f32.xlu0 %v49
    %v51 = vpop.xlane.xlu0 %50
    %v52 = vcvt.f32.s32 %v51
    %v53 = vcvt.f32.s32 %v47
    %v54 = vshll.u32 %v53, 16
    %v55 = vadd.s32 %v54, %v52
    %v56 = vld [vmem:[#allocation2] sm:$0xff]
    %vm57 = vcmp.gt.f32.partialorder %v38, %v56
    %v58 = vld [vmem:[#allocation3] sm:$0xff]
    %v59 = vsel %vm57, %v55, %v58
    %vm60 = vcmask 7168
    %61 = vst.msk [vmem:[#allocation3] sm:$0xff] %vm60, %v59
    %v62 = vld [vmem:[#allocation2] sm:$0xff]
    %v63 = vsel %vm57, %v38, %v62
    %64 = vst.msk [vmem:[#allocation2] sm:$0xff] %vm60, %v63
    // Predicated region
    $region14: #{embedding_lookup.2} parent=1 // pred_check
      %p65 = pneg %p22
    $region15: #{embedding_lookup.2} parent=1 // pred_check_branch
      %67 = sbr.rel (%p65) target = $region17
    $region16: #{embedding_lookup.2} parent=1 // pred_region
      %v68 = vld [vmem:[#allocation3] sm:$0xff]
      %69 = vst.msk [vmem:[%s1] sm:$0xff] %vm60, %v68
    $region17: #{embedding_lookup.2} parent=1 // pred_fallthru
      _
    // Predicated region
    $region18: #{embedding_lookup.2} parent=1 // pred_check
      _
    $region19: #{embedding_lookup.2} parent=1 // pred_check_branch
      %71 = sbr.rel (0) target = $region21
    $region20: #{embedding_lookup.2} parent=1 // pred_region
      _
    $region21: #{embedding_lookup.2} parent=1 // pred_fallthru
      _
    // Predicated region
    $region22: #{embedding_lookup.2} parent=1 // pred_check
      _
    $region23: #{embedding_lookup.2} parent=1 // pred_check_branch
      %73 = sbr.rel (0) target = $region25
    $region24: #{embedding_lookup.2} parent=1 // pred_region
      _
    $region25: #{embedding_lookup.2} parent=1 // pred_fallthru
      _
    %74 = vsyncpa [#allocation5], 1

// kernel: embedding_lookup.3
$region0: #{embedding_lookup.3}
  #allocation0 [shape = 'u32[]', space=smem, size = 0x4, offset = 0x4, fixed_abs, tag = 'smem constant byte address 0x4 - core index']
  #allocation1 [shape = 'u32[72,128]{1,0:T(1,128)}', space=vmem, size = 0x9000, scoped, tag = 'internal scratch']
  #allocation2 [shape = 's32[1]{0}', space=sflag, size = 0x4, scoped, tag = 'scoped memory for embedding_lookup.3']
  #allocation3 [shape = 'u8[512]{0}', space=smem, size = 0x200, scoped, tag = 'prefetched SMEM operand 0']
  %s0 = inlined_call_operand.vmem [shape: s32[8], index: 0, kind: input, shape index: {}]
  %s1 = inlined_call_operand.vmem [shape: f32[32,1,8], index: 1, kind: input, shape index: {}]
  %s2 = inlined_call_operand.hbm [shape: f32[8,1,8], index: 2, kind: output, shape index: {}]
  %s3 = sld [smem:[#allocation0]]
  $region37: #{embedding_lookup.3} parent=0
    _
  %s5 = ssub.s32 1, %s3
  %s6 = scalar_select 0, %s5, %s3
  %s8 = sshll.u32 %s0, 4
  %s9 = int_to_ptr.vmem [resolvable:$true] %s8
  %11 = dma.vmem_to_smem %s9, 16, [#allocation3], [#allocation2]
  %13 = dma.done [#allocation2], 16
  %14 = sfence
  $region1: #{embedding_lookup.3} parent=0
    #allocation4 [shape = 'u8[1024]{0}', space=vmem, size = 0x400, scoped, tag = 'output window, operand 0']
    #allocation5 [shape = 's32[2]{0}', space=sflag, size = 0x8, scoped, tag = 'scoped memory for embedding_lookup.3']
    %15 = vsyncpa [#allocation5], 0
    %s16 = scalar_lea.sflag [#allocation5], 1
    %17 = vsyncpa %s16, 0
    loop: start=0, step=1, limit=10
    $region2: #{embedding_lookup.3} parent=1 // loop_pre_header
      _
    $region3: #{embedding_lookup.3} parent=1 // loop_header
      %s19 = sphi 0, %s23
      %p20 = scmp.ge.s32.totalorder %s19, 10
      %s31 = sphi 0, %s33
      %s34 = sphi 0, %s31
      %s35 = sphi 0, %s34
      %s51 = sphi 0, %s35
      %s57 = sphi 0, %s59
      %s60 = sphi 0, %s57
      %s61 = sphi 0, %s60
      %s77 = sphi 0, %s61
    $region4: #{embedding_lookup.3} parent=1 // loop_header_branch
      %22 = sbr.rel (%p20) target = $region8
    $region5: #{embedding_lookup.3} parent=1 // loop_body
      %s24 = ssub.s32 %s19, 1
      %s25 = ssub.s32 %s19, 2
      %s26 = sadd.s32 %s19, 1
      %s27 = sld [smem:[#allocation3 + %s19]]
      %s28 = sld [smem:[#allocation3 + %s26]]
      %s29 = ssub.s32 %s27, %s28
      %p30 = scmp.eq.s32.totalorder %s29, 0
      %s32 = sadd.s32 %s31, 1
      %s33 = scalar_select %p30, %s31, %s32
      %p36 = pneg %p30
      %p37 = scmp.eq.s32.totalorder %s19, 7
      %p38 = por %p36, %p37
      %p39 = scmp.ne.s32.totalorder %s31, %s34
      %p40 = scmp.eq.s32.totalorder %s19, 0
      %p41 = por %p39, %p40
      %p42 = scmp.ne.s32.totalorder %s31, %s34
      %p43 = scmp.eq.s32.totalorder %s24, 7
      %p44 = por %p42, %p43
      %p45 = scmp.ne.s32.totalorder %s34, %s35
      %p46 = scmp.eq.s32.totalorder %s24, 0
      %p47 = por %p45, %p46
      %p48 = scmp.ne.s32.totalorder %s34, %s35
      %p49 = scmp.eq.s32.totalorder %s25, 7
      %p50 = por %p48, %p49
      %p52 = scmp.ne.s32.totalorder %s35, %s51
      %p53 = scmp.eq.s32.totalorder %s25, 0
      %p54 = por %p52, %p53
      %s55 = ssub.s32 %s19, %s26
      %p56 = scmp.eq.s32.totalorder %s55, 0
      %s58 = sadd.s32 %s57, 1
      %s59 = scalar_select %p56, %s57, %s58
      %p62 = pneg %p56
      %p63 = scmp.eq.s32.totalorder %s19, 7
      %p64 = por %p62, %p63
      %p65 = scmp.ne.s32.totalorder %s57, %s60
      %p66 = scmp.eq.s32.totalorder %s19, 0
      %p67 = por %p65, %p66
      %p68 = scmp.ne.s32.totalorder %s57, %s60
      %p69 = scmp.eq.s32.totalorder %s24, 7
      %p70 = por %p68, %p69
      %p71 = scmp.ne.s32.totalorder %s60, %s61
      %p72 = scmp.eq.s32.totalorder %s24, 0
      %p73 = por %p71, %p72
      %p74 = scmp.ne.s32.totalorder %s60, %s61
      %p75 = scmp.eq.s32.totalorder %s25, 7
      %p76 = por %p74, %p75
      %p78 = scmp.ne.s32.totalorder %s61, %s77
      %p79 = scmp.eq.s32.totalorder %s25, 0
      %p80 = por %p78, %p79
      %p81 = scmp.le.s32.totalorder 1, %s19
      %p82 = scmp.lt.s32.totalorder %s19, 9
      %p83 = pnand %p81, %p82
      %p84 = pneg %p83
      // Predicated region
      $region9: #{embedding_lookup.3} parent=5 // pred_check
        _
      $region10: #{embedding_lookup.3} parent=5 // pred_check_branch
        %86 = sbr.rel (%p83) target = $region12
      $region11: #{embedding_lookup.3} parent=5 // pred_region
        %s87 = ssub.s32 %s19, 1
      $region12: #{embedding_lookup.3} parent=5 // pred_fallthru
        _
      %p88 = scmp.lt.s32.totalorder %s19, 8
      // Predicated region
      $region13: #{embedding_lookup.3} parent=5 // pred_check
        %p89 = pneg %p88
      $region14: #{embedding_lookup.3} parent=5 // pred_check_branch
        %91 = sbr.rel (%p89) target = $region16
      $region15: #{embedding_lookup.3} parent=5 // pred_region
        // Predicated region
        $region17: #{embedding_lookup.3} parent=15 // pred_check
          %p92 = pneg %p41
        $region18: #{embedding_lookup.3} parent=15 // pred_check_branch
          %94 = sbr.rel (%p92) target = $region20
        $region19: #{embedding_lookup.3} parent=15 // pred_region
          %s95 = sld [smem:[#allocation3 + %s19]]
          %p96 = scmp.lt.s32.totalorder %s95, 31
          %s97 = scalar_select %p96, %s95, 31
          %s98 = scalar_lea.vmem %s1, %s97
          %s99 = sld [smem:[#allocation3 + %s19]]
        $region20: #{embedding_lookup.3} parent=15 // pred_fallthru
          _
      $region16: #{embedding_lookup.3} parent=5 // pred_fallthru
        _
      %p100 = scmp.le.s32.totalorder 1, %s19
      %p101 = scmp.lt.s32.totalorder %s19, 9
      %p102 = pnand %p100, %p101
      %p103 = pneg %p102
      // Predicated region
      $region21: #{embedding_lookup.3} parent=5 // pred_check
        _
      $region22: #{embedding_lookup.3} parent=5 // pred_check_branch
        %105 = sbr.rel (%p102) target = $region24
      $region23: #{embedding_lookup.3} parent=5 // pred_region
        %s106 = ssub.s32 %s19, 1
        %s107 = sld [smem:[#allocation3 + %s24]]
        %p108 = scmp.lt.s32.totalorder %s107, 31
        %s109 = scalar_select %p108, %s107, 31
        %s110 = scalar_lea.vmem %s1, %s109
        %p111 = pneg %p47
        %p112 = pneg %p44
        %p113 = pneg %p73
        %p114 = pneg %p70
        %s115 = sand.u32 %s60, 1
        %s116 = scalar_lea.sflag [#allocation5], %s115
        %s117 = sand.u32 %s60, 1
        %s118 = scalar_lea.vmem [#allocation4], %s117
        %s119 = sld [smem:[#allocation3 + %s24]]
        %p120 = scmp.lt.s32.totalorder %s119, 31
        %s121 = scalar_select %p120, %s119, 31
        %s122 = scalar_lea.vmem %s1, %s121
        %s123 = sld [smem:[#allocation3 + %s24]]
        %v124 = vld [vmem:[%s122] sm:$0x1]
        %vm125 = vcmask 57344
        %126 = vst.msk [vmem:[%s118] sm:$0x1] %vm125, %v124
        %s127 = sand.u32 %s60, 1
        %s128 = scalar_lea.sflag [#allocation5], %s127
        %s129 = sand.u32 %s60, 1
        %s130 = scalar_lea.vmem [#allocation4], %s129
        // Predicated region
        $region25: #{embedding_lookup.3} parent=23 // pred_check
          %p131 = pneg %p70
        $region26: #{embedding_lookup.3} parent=23 // pred_check_branch
          %133 = sbr.rel (%p131) target = $region28
        $region27: #{embedding_lookup.3} parent=23 // pred_region
          %135 = vsyncadd %s128, 0
          %s136 = scalar_lea.hbm %s2, %s24
          %s138 = sshll.u32 %s130, 4
          %s139 = int_to_ptr.vmem [resolvable:$true] %s138
          %s140 = sshll.u32 %s136, 4
          %s141 = int_to_ptr.hbm [resolvable:$true] %s140
          %143 = dma.vmem_to_hbm [thread:$0]  %s139, 16, %s141, %s128
        $region28: #{embedding_lookup.3} parent=23 // pred_fallthru
          _
      $region24: #{embedding_lookup.3} parent=5 // pred_fallthru
        _
      %p144 = scmp.le.s32.totalorder 2, %s19
      // Predicated region
      $region29: #{embedding_lookup.3} parent=5 // pred_check
        %p145 = pneg %p144
      $region30: #{embedding_lookup.3} parent=5 // pred_check_branch
        %147 = sbr.rel (%p145) target = $region32
      $region31: #{embedding_lookup.3} parent=5 // pred_region
        %s148 = ssub.s32 %s19, 2
        // Predicated region
        $region33: #{embedding_lookup.3} parent=31 // pred_check
          %p149 = pneg %p76
        $region34: #{embedding_lookup.3} parent=31 // pred_check_branch
          %151 = sbr.rel (%p149) target = $region36
        $region35: #{embedding_lookup.3} parent=31 // pred_region
          %s152 = sand.u32 %s61, 1
          %s153 = scalar_lea.sflag [#allocation5], %s152
          %s154 = sand.u32 %s61, 1
          %s155 = scalar_lea.vmem [#allocation4], %s154
          %157 = dma.done %s153, 16
        $region36: #{embedding_lookup.3} parent=31 // pred_fallthru
          _
      $region32: #{embedding_lookup.3} parent=5 // pred_fallthru
        _
    $region6: #{embedding_lookup.3} parent=1 // loop_footer
      %s23 = sadd.s32 1, %s19
    $region7: #{embedding_lookup.3} parent=1 // loop_footer_branch
      %18 = sbr.rel target = $region3
    $region8: #{embedding_lookup.3} parent=1 // loop_exit
      _
    %158 = vsyncpa [#allocation5], 1
    %s159 = scalar_lea.sflag [#allocation5], 1
    %160 = vsyncpa %s159, 1

</llo_original>
